<compile_context>
chip_gen: v5e
topology: v5e:2x2
jax: 0.10.0
libtpu: 0.0.40
codegen_flags: <defaults>
</compile_context>

<pallas_src>
import functools

import numpy as np
import jax
import jax.numpy as jnp
from jax.experimental import pallas as pl
from jax.experimental.pallas import tpu as pltpu


def _round_up(v, m):
    return (v + m - 1) // m * m


def _vmem_budget_bytes():
    """Scoped-VMEM budget = physical capacity minus headroom (per generation)."""
    try:
        cap = int(pltpu.get_tpu_info().vmem_capacity_bytes)
    except Exception:
        cap = 64 << 20  # conservative fallback (v7x physical VMEM per TC)
    return max(cap - (16 << 20), 24 << 20)   # v7x: 48 MiB, v5e/v6e: 112 MiB


# --------------------------------------------------------------------------
# Fast path: whole [B, Cblk, 3*Npad] slab per grid step (stats + apply fused).
# --------------------------------------------------------------------------
def _vn_bn_slab_kernel(gamma_ref, beta_ref, x_ref, o_ref, *, eps, n_valid, n_pad):
    f32 = jnp.float32
    x0 = x_ref[:, :, 0 * n_pad:1 * n_pad].astype(f32)
    x1 = x_ref[:, :, 1 * n_pad:2 * n_pad].astype(f32)
    x2 = x_ref[:, :, 2 * n_pad:3 * n_pad].astype(f32)
    sumsq = x0 * x0 + x1 * x1 + x2 * x2                 # (B, Cblk, n_pad)

    # Single EUP pass: rsqrt once; norm derived as sumsq * rsqrt(sumsq).
    # The where-guard keeps padded / zero-vector lanes from injecting NaN
    # into the per-channel statistics.
    inv_norm = jax.lax.rsqrt(sumsq)
    norm = jnp.where(sumsq > 0.0, sumsq * inv_norm, 0.0)

    # Per-channel batch stats over (B, N): reduce over B first (VALU adds),
    # then a single cross-lane (XLU) reduction per channel block.
    count = float(x_ref.shape[0] * n_valid)
    s1 = jnp.sum(jnp.sum(norm, axis=0, keepdims=True), axis=2, keepdims=True)
    mean = s1 / count                                   # (1, Cblk, 1)

    # Centered (two-pass) variance: more stable than E[x^2]-E[x]^2; the slab
    # is already VMEM-resident so the extra pass is VALU-only.
    d = norm - mean
    if n_pad != n_valid:
        # Padded lanes would otherwise contribute (0 - mean)^2 to the variance.
        lane = jax.lax.broadcasted_iota(jnp.int32, d.shape, 2)
        d = jnp.where(lane < n_valid, d, 0.0)
    var = jnp.sum(jnp.sum(d * d, axis=0, keepdims=True), axis=2,
                  keepdims=True) / count
    inv_std = jax.lax.rsqrt(var + eps)

    # Fuse BN affine + divide-by-norm:  out = x * (a + b * rsqrt(sumsq)).
    a = gamma_ref[...] * inv_std                        # (1, Cblk, 1)
    b = beta_ref[...] - a * mean                        # (1, Cblk, 1)
    scale = a + b * inv_norm                            # (B, Cblk, n_pad)

    # Apply phase: re-slice x_ref (drops the f32 temporaries' live ranges) and
    # multiply in native bf16 on v6e/v7x when the input is bf16.
    if jnp.dtype(x_ref.dtype) == jnp.dtype(jnp.bfloat16):
        # TODO(synk): keep f32 here on v5e (no bf16 VPU).
        scale = scale.astype(jnp.bfloat16)
    for k in range(3):
        sl = slice(k * n_pad, (k + 1) * n_pad)
        o_ref[:, :, sl] = (x_ref[:, :, sl] * scale).astype(o_ref.dtype)


# --------------------------------------------------------------------------
# Two-pass path (large B*N): B-tiled stats reduction, then fused apply.
# --------------------------------------------------------------------------
def _vn_bn_stats_kernel(x_ref, s1_ref, s2_ref, *, n_pad):
    # x_ref: (tile_b, Cblk, 3*n_pad); s1/s2: (Cblk, 1) accumulators, resident
    # across the b grid axis (same output block index for every b step).
    @pl.when(pl.program_id(1) == 0)
    def _():
        s1_ref[...] = jnp.zeros_like(s1_ref)
        s2_ref[...] = jnp.zeros_like(s2_ref)

    f32 = jnp.float32
    x0 = x_ref[:, :, 0 * n_pad:1 * n_pad].astype(f32)
    x1 = x_ref[:, :, 1 * n_pad:2 * n_pad].astype(f32)
    x2 = x_ref[:, :, 2 * n_pad:3 * n_pad].astype(f32)
    sumsq = x0 * x0 + x1 * x1 + x2 * x2
    inv_norm = jax.lax.rsqrt(sumsq)
    norm = jnp.where(sumsq > 0.0, sumsq * inv_norm, 0.0)

    # Padded N lanes carry x == 0 so they contribute nothing to either sum.
    # Reduce B first (VALU), then one XLU lane reduce.
    s1_ref[...] += jnp.sum(jnp.sum(norm, axis=0), axis=-1, keepdims=True)
    s2_ref[...] += jnp.sum(jnp.sum(sumsq, axis=0), axis=-1, keepdims=True)


def _vn_bn_apply_kernel(a_ref, b_ref, x_ref, o_ref, *, n_pad):
    f32 = jnp.float32
    x0 = x_ref[:, :, 0 * n_pad:1 * n_pad].astype(f32)
    x1 = x_ref[:, :, 1 * n_pad:2 * n_pad].astype(f32)
    x2 = x_ref[:, :, 2 * n_pad:3 * n_pad].astype(f32)
    sumsq = x0 * x0 + x1 * x1 + x2 * x2
    scale = a_ref[...] + b_ref[...] * jax.lax.rsqrt(sumsq)
    if jnp.dtype(x_ref.dtype) == jnp.dtype(jnp.bfloat16):
        scale = scale.astype(jnp.bfloat16)
    for k in range(3):
        sl = slice(k * n_pad, (k + 1) * n_pad)
        o_ref[:, :, sl] = (x_ref[:, :, sl] * scale).astype(o_ref.dtype)


# --------------------------------------------------------------------------
# Wrapper
# --------------------------------------------------------------------------
def vn_batch_norm(x, gamma, beta, *, eps=1e-5, two_pass=None, tile_b=None):
    """x: [B, C, 3, *spatial].  gamma, beta: [C].  Training-mode batch stats."""
    orig_shape = x.shape
    B, C, three = x.shape[0], x.shape[1], x.shape[2]
    assert three == 3, "axis 2 must be the 3-d vector axis"
    spatial = x.shape[3:]
    N = int(np.prod(spatial)) if spatial else 1
    x4 = x.reshape(B, C, 3, N)

    # Lane-align N (3 and N are contiguous minor dims -> the repack is free).
    # TODO(synk): mask the N tail in-kernel (iota on the last lane tile)
    # instead of this pad + output slice when N % 128 != 0.
    n_pad = max(_round_up(N, 128), 128)
    if n_pad != N:
        x4 = jnp.pad(x4, ((0, 0), (0, 0), (0, 0), (0, n_pad - N)))

    itemsize = x4.dtype.itemsize
    budget = _vmem_budget_bytes()

    # Per-channel VMEM cost of the single-pass (whole-slab) path: in + out
    # double-buffered blocks plus ~6 f32 temporaries of shape (B, n_pad).
    row_bytes = B * 3 * n_pad * itemsize
    per_c = 4 * row_bytes + 6 * B * n_pad * 4
    if two_pass is None:
        two_pass = per_c * min(8, C) > budget

    # ---- choose the channel block (multiple of 8, or the whole C) ----
    if two_pass:
        c_block = C if C < 8 else 8
    else:
        c_target = max(8, ((2 << 20) // max(row_bytes, 1)) // 8 * 8)
        c_vmem = max(8, (budget // max(per_c, 1)) // 8 * 8)
        cand = min(c_target, c_vmem)
        if C >= 16:
            # keep >= 2 channel blocks so megacore (v7x: 2 TCs) can shard them
            cand = min(cand, _round_up((C + 1) // 2, 8))
        if C <= cand:
            c_block = C                      # one whole-C block, no padding
        else:
            c_pad8 = _round_up(C, 8)
            c_block = 8
            for t in range(cand // 8 * 8, 7, -8):   # minimize channel padding
                if c_pad8 % t == 0:
                    c_block = t
                    break
    c_pad = C if c_block == C else _round_up(C, c_block)
    if c_pad != C:
        # TODO(synk): mask the C tail in-kernel instead of padding.
        x4 = jnp.pad(x4, ((0, 0), (0, c_pad - C), (0, 0), (0, 0)))
        gamma = jnp.pad(gamma, (0, c_pad - C))
        beta = jnp.pad(beta, (0, c_pad - C))

    x3 = x4.reshape(B, c_pad, 3 * n_pad)     # free repack
    grid_c = c_pad // c_block

    if not two_pass:
        g3 = gamma.reshape(1, c_pad, 1).astype(jnp.float32)
        b3 = beta.reshape(1, c_pad, 1).astype(jnp.float32)
        out3 = pl.pallas_call(
            functools.partial(_vn_bn_slab_kernel, eps=eps, n_valid=N,
                              n_pad=n_pad),
            grid=(grid_c,),
            in_specs=[
                pl.BlockSpec((1, c_block, 1), lambda c: (0, c, 0)),           # gamma
                pl.BlockSpec((1, c_block, 1), lambda c: (0, c, 0)),           # beta
                pl.BlockSpec((B, c_block, 3 * n_pad), lambda c: (0, c, 0)),   # x
            ],
            out_specs=pl.BlockSpec((B, c_block, 3 * n_pad), lambda c: (0, c, 0)),
            out_shape=jax.ShapeDtypeStruct((B, c_pad, 3 * n_pad), x.dtype),
            compiler_params=pltpu.CompilerParams(
                dimension_semantics=("parallel",),
                vmem_limit_bytes=budget,
            ),
        )(g3, b3, x3)
    else:
        # -------- pass 1: per-channel sum(norm), sum(norm^2) over B tiles ---
        per_b = c_block * 3 * n_pad * itemsize
        per_b_cost = 4 * per_b + 6 * c_block * n_pad * 4
        cap = int(max(1, min(B, (4 << 20) // max(per_b, 1),
                             budget // max(per_b_cost, 1))))
        if tile_b is not None:
            cap = int(max(1, min(cap, tile_b)))
        tb = 1
        for t in range(cap, 0, -1):          # largest divisor of B (no overhang)
            if B % t == 0:
                tb = t
                break
        tile_b = tb
        grid_b = B // tile_b
        # TODO(synk): if even (1, c_block, 3*n_pad) overflows VMEM (huge N),
        # add an N tile axis on the un-flattened [B, C, 3, N] layout.

        s1, s2 = pl.pallas_call(
            functools.partial(_vn_bn_stats_kernel, n_pad=n_pad),
            grid=(grid_c, grid_b),
            in_specs=[
                pl.BlockSpec((tile_b, c_block, 3 * n_pad),
                             lambda c, b: (b, c, 0)),
            ],
            out_specs=(
                pl.BlockSpec((c_block, 1), lambda c, b: (c, 0)),
                pl.BlockSpec((c_block, 1), lambda c, b: (c, 0)),
            ),
            out_shape=(
                jax.ShapeDtypeStruct((c_pad, 1), jnp.float32),
                jax.ShapeDtypeStruct((c_pad, 1), jnp.float32),
            ),
            compiler_params=pltpu.CompilerParams(
                dimension_semantics=("parallel", "arbitrary"),
                vmem_limit_bytes=budget,
            ),
        )(x3)

        # Tiny per-channel combine (C scalars) between the two passes.
        # TODO(synk): one-pass variance here (two-pass would need a 3rd HBM
        # sweep); acceptable since norm stats are O(1) in f32.
        count = float(B * N)
        mean = s1 / count
        var = jnp.maximum(s2 / count - mean * mean, 0.0)    # biased variance
        inv_std = jax.lax.rsqrt(var + eps)
        a = gamma.reshape(c_pad, 1).astype(jnp.float32) * inv_std
        bb = beta.reshape(c_pad, 1).astype(jnp.float32) - a * mean
        a3 = a.reshape(1, c_pad, 1)
        bb3 = bb.reshape(1, c_pad, 1)

        # -------- pass 2: fused scale apply -------------------------------
        out3 = pl.pallas_call(
            functools.partial(_vn_bn_apply_kernel, n_pad=n_pad),
            grid=(grid_c, grid_b),
            in_specs=[
                pl.BlockSpec((1, c_block, 1), lambda c, b: (0, c, 0)),
                pl.BlockSpec((1, c_block, 1), lambda c, b: (0, c, 0)),
                pl.BlockSpec((tile_b, c_block, 3 * n_pad),
                             lambda c, b: (b, c, 0)),
            ],
            out_specs=pl.BlockSpec((tile_b, c_block, 3 * n_pad),
                                   lambda c, b: (b, c, 0)),
            out_shape=jax.ShapeDtypeStruct((B, c_pad, 3 * n_pad), x.dtype),
            compiler_params=pltpu.CompilerParams(
                dimension_semantics=("parallel", "parallel"),
                vmem_limit_bytes=budget,
            ),
        )(a3, bb3, x3)

    out4 = out3.reshape(B, c_pad, 3, n_pad)
    if c_pad != C or n_pad != N:
        out4 = out4[:, :C, :, :N]
    return out4.reshape(orig_shape)


def vn_batch_norm_ref(x, gamma, beta, *, eps=1e-5):
    """Pure-JAX reference mirroring the PyTorch forward (training-mode BN)."""
    norm = jnp.sqrt(jnp.sum(x * x, axis=2))                       # [B, C, *sp]
    red_axes = (0,) + tuple(range(2, norm.ndim))
    mean = jnp.mean(norm, axis=red_axes, keepdims=True)
    var = jnp.mean((norm - mean) ** 2, axis=red_axes, keepdims=True)
    shape = (1, norm.shape[1]) + (1,) * (norm.ndim - 2)
    g = gamma.reshape(shape)
    b = beta.reshape(shape)
    norm_bn = (norm - mean) * jax.lax.rsqrt(var + eps) * g + b
    return x / jnp.expand_dims(norm, 2) * jnp.expand_dims(norm_bn, 2)


if __name__ == "__main__":
    key = jax.random.PRNGKey(0)
    k1, k2, k3, k4, k5 = jax.random.split(key, 5)

    # dim=4 case: x = [B, num_features, 3, N_samples]  (aligned fast path,
    # 2 channel blocks -> megacore-shardable grid).
    B, C, N = 2, 16, 128
    x = jax.random.normal(k1, (B, C, 3, N), dtype=jnp.float32)
    gamma = 1.0 + 0.1 * jax.random.normal(k2, (C,), dtype=jnp.float32)
    beta = 0.1 * jax.random.normal(k3, (C,), dtype=jnp.float32)
    out = jax.block_until_ready(vn_batch_norm(x, gamma, beta))
    ref = vn_batch_norm_ref(x, gamma, beta)
    np.testing.assert_allclose(np.asarray(out), np.asarray(ref),
                               rtol=2e-4, atol=1e-5)

    # dim=5 case: x = [B, num_features, 3, Ns, Nm]; small C (whole-C block,
    # no channel pad) and N padding (35 -> 128).
    x2 = jax.random.normal(k4, (2, 4, 3, 5, 7), dtype=jnp.float32)
    gamma2 = jnp.full((4,), 1.2, jnp.float32)
    beta2 = jnp.full((4,), 0.05, jnp.float32)
    out2 = jax.block_until_ready(vn_batch_norm(x2, gamma2, beta2))
    ref2 = vn_batch_norm_ref(x2, gamma2, beta2)
    np.testing.assert_allclose(np.asarray(out2), np.asarray(ref2),
                               rtol=2e-4, atol=1e-5)

    # Force the two-pass (B-tiled) path that is auto-selected when the slab
    # would overflow VMEM (e.g. v7x's 64 MiB) to make sure it runs.
    x3_ = jax.random.normal(k5, (6, 8, 3, 4, 32), dtype=jnp.float32)
    gamma3 = 1.0 + 0.1 * jnp.arange(8, dtype=jnp.float32) / 8.0
    beta3 = 0.02 * jnp.arange(8, dtype=jnp.float32)
    out3 = jax.block_until_ready(
        vn_batch_norm(x3_, gamma3, beta3, two_pass=True, tile_b=2))
    ref3 = vn_batch_norm_ref(x3_, gamma3, beta3)
    np.testing.assert_allclose(np.asarray(out3), np.asarray(ref3),
                               rtol=2e-4, atol=1e-5)

    print("KERNEL_OK")
</pallas_src>

<mosaic_0001>
module attributes {stable_mosaic.version = 11 : i64} {
  func.func @_vn_bn_slab_kernel(%arg0: i32, %arg1: memref<1x8x1xf32, #tpu.memory_space<vmem>>, %arg2: memref<1x8x1xf32, #tpu.memory_space<vmem>>, %arg3: memref<2x8x384xf32, #tpu.memory_space<vmem>>, %arg4: memref<2x8x384xf32, #tpu.memory_space<vmem>>) attributes {dimension_semantics = [#tpu.dimension_semantics<parallel>], iteration_bounds = array<i64: 2>, scalar_prefetch = 0 : i64, scratch_operands = 0 : i64, tpu.core_type = #tpu.core_type<tc>, window_params = [{transform_indices = @transform_0, window_bounds = array<i64: 1, 8, 1>}, {transform_indices = @transform_1, window_bounds = array<i64: 1, 8, 1>}, {transform_indices = @transform_2, window_bounds = array<i64: 2, 8, 384>}, {transform_indices = @transform_3, window_bounds = array<i64: 2, 8, 384>}]} {
    %c0 = arith.constant 0 : index
    %c0_0 = arith.constant 0 : index
    %c0_1 = arith.constant 0 : index
    %0 = vector.load %arg3[%c0, %c0_0, %c0_1] : memref<2x8x384xf32, #tpu.memory_space<vmem>>, vector<2x8x128xf32>
    %c0_2 = arith.constant 0 : index
    %c0_3 = arith.constant 0 : index
    %c128 = arith.constant 128 : index
    %1 = vector.load %arg3[%c0_2, %c0_3, %c128] : memref<2x8x384xf32, #tpu.memory_space<vmem>>, vector<2x8x128xf32>
    %c0_4 = arith.constant 0 : index
    %c0_5 = arith.constant 0 : index
    %c256 = arith.constant 256 : index
    %2 = vector.load %arg3[%c0_4, %c0_5, %c256] : memref<2x8x384xf32, #tpu.memory_space<vmem>>, vector<2x8x128xf32>
    %3 = arith.mulf %0, %0 : vector<2x8x128xf32>
    %4 = arith.mulf %1, %1 : vector<2x8x128xf32>
    %5 = arith.addf %3, %4 : vector<2x8x128xf32>
    %6 = arith.mulf %2, %2 : vector<2x8x128xf32>
    %7 = arith.addf %5, %6 : vector<2x8x128xf32>
    %8 = math.rsqrt %7 : vector<2x8x128xf32>
    %cst = arith.constant 0.000000e+00 : f32
    %9 = vector.broadcast %cst : f32 to vector<2x8x128xf32>
    %10 = arith.cmpf ogt, %7, %9 : vector<2x8x128xf32>
    %11 = arith.mulf %7, %8 : vector<2x8x128xf32>
    %cst_6 = arith.constant 0.000000e+00 : f32
    %12 = vector.broadcast %cst_6 : f32 to vector<2x8x128xf32>
    %13 = arith.select %10, %11, %12 : vector<2x8x128xi1>, vector<2x8x128xf32>
    %cst_7 = arith.constant dense<0.000000e+00> : vector<8x128xf32>
    %14 = vector.multi_reduction <add>, %13, %cst_7 [0] : vector<2x8x128xf32> to vector<8x128xf32>
    %15 = vector.shape_cast %14 : vector<8x128xf32> to vector<1x8x128xf32>
    %cst_8 = arith.constant dense<0.000000e+00> : vector<1x8xf32>
    %16 = vector.multi_reduction <add>, %15, %cst_8 [2] : vector<1x8x128xf32> to vector<1x8xf32>
    %17 = vector.shape_cast %16 : vector<1x8xf32> to vector<1x8x1xf32>
    %cst_9 = arith.constant 2.560000e+02 : f32
    %18 = vector.broadcast %cst_9 : f32 to vector<1x8x1xf32>
    %19 = arith.divf %17, %18 : vector<1x8x1xf32>
    %20 = vector.broadcast %19 : vector<1x8x1xf32> to vector<2x8x128xf32>
    %21 = arith.subf %13, %20 : vector<2x8x128xf32>
    %22 = arith.mulf %21, %21 : vector<2x8x128xf32>
    %cst_10 = arith.constant dense<0.000000e+00> : vector<8x128xf32>
    %23 = vector.multi_reduction <add>, %22, %cst_10 [0] : vector<2x8x128xf32> to vector<8x128xf32>
    %24 = vector.shape_cast %23 : vector<8x128xf32> to vector<1x8x128xf32>
    %cst_11 = arith.constant dense<0.000000e+00> : vector<1x8xf32>
    %25 = vector.multi_reduction <add>, %24, %cst_11 [2] : vector<1x8x128xf32> to vector<1x8xf32>
    %26 = vector.shape_cast %25 : vector<1x8xf32> to vector<1x8x1xf32>
    %cst_12 = arith.constant 2.560000e+02 : f32
    %27 = vector.broadcast %cst_12 : f32 to vector<1x8x1xf32>
    %28 = arith.divf %26, %27 : vector<1x8x1xf32>
    %cst_13 = arith.constant 9.99999974E-6 : f32
    %29 = vector.broadcast %cst_13 : f32 to vector<1x8x1xf32>
    %30 = arith.addf %28, %29 : vector<1x8x1xf32>
    %31 = math.rsqrt %30 : vector<1x8x1xf32>
    %c0_14 = arith.constant 0 : index
    %c0_15 = arith.constant 0 : index
    %c0_16 = arith.constant 0 : index
    %32 = vector.load %arg1[%c0_14, %c0_15, %c0_16] : memref<1x8x1xf32, #tpu.memory_space<vmem>>, vector<1x8x1xf32>
    %33 = arith.mulf %32, %31 : vector<1x8x1xf32>
    %c0_17 = arith.constant 0 : index
    %c0_18 = arith.constant 0 : index
    %c0_19 = arith.constant 0 : index
    %34 = vector.load %arg2[%c0_17, %c0_18, %c0_19] : memref<1x8x1xf32, #tpu.memory_space<vmem>>, vector<1x8x1xf32>
    %35 = arith.mulf %33, %19 : vector<1x8x1xf32>
    %36 = arith.subf %34, %35 : vector<1x8x1xf32>
    %37 = vector.broadcast %36 : vector<1x8x1xf32> to vector<2x8x128xf32>
    %38 = arith.mulf %37, %8 : vector<2x8x128xf32>
    %39 = vector.broadcast %33 : vector<1x8x1xf32> to vector<2x8x128xf32>
    %40 = arith.addf %39, %38 : vector<2x8x128xf32>
    %c0_20 = arith.constant 0 : index
    %c0_21 = arith.constant 0 : index
    %c0_22 = arith.constant 0 : index
    %41 = vector.load %arg3[%c0_20, %c0_21, %c0_22] : memref<2x8x384xf32, #tpu.memory_space<vmem>>, vector<2x8x128xf32>
    %42 = arith.mulf %41, %40 : vector<2x8x128xf32>
    %c0_23 = arith.constant 0 : index
    %c0_24 = arith.constant 0 : index
    %c0_25 = arith.constant 0 : index
    %43 = vector.load %arg4[%c0_23, %c0_24, %c0_25] : memref<2x8x384xf32, #tpu.memory_space<vmem>>, vector<2x8x128xf32>
    tpu.vector_store %arg4[%c0_23, %c0_24, %c0_25], %42 {strides = array<i32>} : memref<2x8x384xf32, #tpu.memory_space<vmem>>, vector<2x8x128xf32>,
    %c0_26 = arith.constant 0 : index
    %c0_27 = arith.constant 0 : index
    %c128_28 = arith.constant 128 : index
    %44 = vector.load %arg3[%c0_26, %c0_27, %c128_28] : memref<2x8x384xf32, #tpu.memory_space<vmem>>, vector<2x8x128xf32>
    %45 = arith.mulf %44, %40 : vector<2x8x128xf32>
    %c0_29 = arith.constant 0 : index
    %c0_30 = arith.constant 0 : index
    %c128_31 = arith.constant 128 : index
    %46 = vector.load %arg4[%c0_29, %c0_30, %c128_31] : memref<2x8x384xf32, #tpu.memory_space<vmem>>, vector<2x8x128xf32>
    tpu.vector_store %arg4[%c0_29, %c0_30, %c128_31], %45 {strides = array<i32>} : memref<2x8x384xf32, #tpu.memory_space<vmem>>, vector<2x8x128xf32>,
    %c0_32 = arith.constant 0 : index
    %c0_33 = arith.constant 0 : index
    %c256_34 = arith.constant 256 : index
    %47 = vector.load %arg3[%c0_32, %c0_33, %c256_34] : memref<2x8x384xf32, #tpu.memory_space<vmem>>, vector<2x8x128xf32>
    %48 = arith.mulf %47, %40 : vector<2x8x128xf32>
    %c0_35 = arith.constant 0 : index
    %c0_36 = arith.constant 0 : index
    %c256_37 = arith.constant 256 : index
    %49 = vector.load %arg4[%c0_35, %c0_36, %c256_37] : memref<2x8x384xf32, #tpu.memory_space<vmem>>, vector<2x8x128xf32>
    tpu.vector_store %arg4[%c0_35, %c0_36, %c256_37], %48 {strides = array<i32>} : memref<2x8x384xf32, #tpu.memory_space<vmem>>, vector<2x8x128xf32>,
    return
  }
  func.func @transform_0(%arg0: i32) -> (i32, i32, i32) {
    %c0_i32 = arith.constant 0 : i32
    %c0_i32_0 = arith.constant 0 : i32
    %c0_i32_1 = arith.constant 0 : i32
    return %c0_i32, %arg0, %c0_i32_0 : i32, i32, i32
  }
  func.func @transform_1(%arg0: i32) -> (i32, i32, i32) {
    %c0_i32 = arith.constant 0 : i32
    %c0_i32_0 = arith.constant 0 : i32
    %c0_i32_1 = arith.constant 0 : i32
    return %c0_i32, %arg0, %c0_i32_0 : i32, i32, i32
  }
  func.func @transform_2(%arg0: i32) -> (i32, i32, i32) {
    %c0_i32 = arith.constant 0 : i32
    %c0_i32_0 = arith.constant 0 : i32
    %c0_i32_1 = arith.constant 0 : i32
    return %c0_i32, %arg0, %c0_i32_0 : i32, i32, i32
  }
  func.func @transform_3(%arg0: i32) -> (i32, i32, i32) {
    %c0_i32 = arith.constant 0 : i32
    %c0_i32_0 = arith.constant 0 : i32
    %c0_i32_1 = arith.constant 0 : i32
    return %c0_i32, %arg0, %c0_i32_0 : i32, i32, i32
  }
}

</mosaic_0001>

<llo_original>
// kernel: tpu_custom_call.1
$region0: #{tpu_custom_call.1}
  #allocation0 [shape = 'u32[]', space=smem, size = 0x4, offset = 0x4, fixed_abs, tag = 'smem constant byte address 0x4 - core index']
  #allocation1 [shape = 'u32[72,128]{1,0:T(1,128)}', space=vmem, size = 0x9000, scoped, tag = 'internal scratch']
  %s0 = inlined_call_operand.vmem [shape: f32[1,16,1], index: 0, kind: input, shape index: {}]
  %s1 = inlined_call_operand.vmem [shape: f32[1,16,1], index: 1, kind: input, shape index: {}]
  %s2 = inlined_call_operand.hbm [shape: f32[2,16,384], index: 2, kind: input, shape index: {}]
  %s3 = inlined_call_operand.hbm [shape: f32[2,16,384], index: 3, kind: output, shape index: {}]
  %s4 = sld [smem:[#allocation0]]
  $region49: #{tpu_custom_call.1} parent=0
    _
  %s6 = ssub.s32 1, %s4
  %s7 = scalar_select 0, %s6, %s4
  $region1: #{tpu_custom_call.1} parent=0
    #allocation2 [shape = 'u8[49152]{0}', space=vmem, size = 0xc000, scoped, tag = 'input window, operand 2']
    #allocation3 [shape = 's32[2]{0}', space=sflag, size = 0x8, scoped, tag = 'scoped memory for tpu_custom_call.1']
    #allocation4 [shape = 's32[2]{0}', space=sflag, size = 0x8, scoped, tag = 'scoped memory for tpu_custom_call.1']
    #allocation5 [shape = 'u8[49152]{0}', space=vmem, size = 0xc000, scoped, tag = 'output window, operand 0']
    %8 = vsyncpa [#allocation3], 0
    %s9 = scalar_lea.sflag [#allocation3], 1
    %10 = vsyncpa %s9, 0
    %11 = vsyncpa [#allocation4], 0
    %s12 = scalar_lea.sflag [#allocation4], 1
    %13 = vsyncpa %s12, 0
    loop: start=0, step=1, limit=4
    $region2: #{tpu_custom_call.1} parent=1 // loop_pre_header
      _
    $region3: #{tpu_custom_call.1} parent=1 // loop_header
      %s15 = sphi 0, %s19
      %p16 = scmp.ge.s32.totalorder %s15, 4
      %s25 = sphi 0, %s27
      %s28 = sphi 0, %s25
      %s29 = sphi 0, %s28
      %s45 = sphi 0, %s29
      %s51 = sphi 0, %s53
      %s54 = sphi 0, %s51
      %s55 = sphi 0, %s54
      %s71 = sphi 0, %s55
      %s77 = sphi 0, %s79
      %s80 = sphi 0, %s77
      %s81 = sphi 0, %s80
      %s97 = sphi 0, %s81
      %s103 = sphi 0, %s105
      %s106 = sphi 0, %s103
      %s107 = sphi 0, %s106
      %s123 = sphi 0, %s107
    $region4: #{tpu_custom_call.1} parent=1 // loop_header_branch
      %18 = sbr.rel (%p16) target = $region8
    $region5: #{tpu_custom_call.1} parent=1 // loop_body
      %s20 = ssub.s32 %s15, 1
      %s21 = ssub.s32 %s15, 2
      %s22 = sadd.s32 %s15, 1
      %s23 = ssub.s32 %s15, %s22
      %p24 = scmp.eq.s32.totalorder %s23, 0
      %s26 = sadd.s32 %s25, 1
      %s27 = scalar_select %p24, %s25, %s26
      %p30 = pneg %p24
      %p31 = scmp.eq.s32.totalorder %s15, 1
      %p32 = por %p30, %p31
      %p33 = scmp.ne.s32.totalorder %s25, %s28
      %p34 = scmp.eq.s32.totalorder %s15, 0
      %p35 = por %p33, %p34
      %p36 = scmp.ne.s32.totalorder %s25, %s28
      %p37 = scmp.eq.s32.totalorder %s20, 1
      %p38 = por %p36, %p37
      %p39 = scmp.ne.s32.totalorder %s28, %s29
      %p40 = scmp.eq.s32.totalorder %s20, 0
      %p41 = por %p39, %p40
      %p42 = scmp.ne.s32.totalorder %s28, %s29
      %p43 = scmp.eq.s32.totalorder %s21, 1
      %p44 = por %p42, %p43
      %p46 = scmp.ne.s32.totalorder %s29, %s45
      %p47 = scmp.eq.s32.totalorder %s21, 0
      %p48 = por %p46, %p47
      %s49 = ssub.s32 %s15, %s22
      %p50 = scmp.eq.s32.totalorder %s49, 0
      %s52 = sadd.s32 %s51, 1
      %s53 = scalar_select %p50, %s51, %s52
      %p56 = pneg %p50
      %p57 = scmp.eq.s32.totalorder %s15, 1
      %p58 = por %p56, %p57
      %p59 = scmp.ne.s32.totalorder %s51, %s54
      %p60 = scmp.eq.s32.totalorder %s15, 0
      %p61 = por %p59, %p60
      %p62 = scmp.ne.s32.totalorder %s51, %s54
      %p63 = scmp.eq.s32.totalorder %s20, 1
      %p64 = por %p62, %p63
      %p65 = scmp.ne.s32.totalorder %s54, %s55
      %p66 = scmp.eq.s32.totalorder %s20, 0
      %p67 = por %p65, %p66
      %p68 = scmp.ne.s32.totalorder %s54, %s55
      %p69 = scmp.eq.s32.totalorder %s21, 1
      %p70 = por %p68, %p69
      %p72 = scmp.ne.s32.totalorder %s55, %s71
      %p73 = scmp.eq.s32.totalorder %s21, 0
      %p74 = por %p72, %p73
      %s75 = ssub.s32 %s15, %s22
      %p76 = scmp.eq.s32.totalorder %s75, 0
      %s78 = sadd.s32 %s77, 1
      %s79 = scalar_select %p76, %s77, %s78
      %p82 = pneg %p76
      %p83 = scmp.eq.s32.totalorder %s15, 1
      %p84 = por %p82, %p83
      %p85 = scmp.ne.s32.totalorder %s77, %s80
      %p86 = scmp.eq.s32.totalorder %s15, 0
      %p87 = por %p85, %p86
      %p88 = scmp.ne.s32.totalorder %s77, %s80
      %p89 = scmp.eq.s32.totalorder %s20, 1
      %p90 = por %p88, %p89
      %p91 = scmp.ne.s32.totalorder %s80, %s81
      %p92 = scmp.eq.s32.totalorder %s20, 0
      %p93 = por %p91, %p92
      %p94 = scmp.ne.s32.totalorder %s80, %s81
      %p95 = scmp.eq.s32.totalorder %s21, 1
      %p96 = por %p94, %p95
      %p98 = scmp.ne.s32.totalorder %s81, %s97
      %p99 = scmp.eq.s32.totalorder %s21, 0
      %p100 = por %p98, %p99
      %s101 = ssub.s32 %s15, %s22
      %p102 = scmp.eq.s32.totalorder %s101, 0
      %s104 = sadd.s32 %s103, 1
      %s105 = scalar_select %p102, %s103, %s104
      %p108 = pneg %p102
      %p109 = scmp.eq.s32.totalorder %s15, 1
      %p110 = por %p108, %p109
      %p111 = scmp.ne.s32.totalorder %s103, %s106
      %p112 = scmp.eq.s32.totalorder %s15, 0
      %p113 = por %p111, %p112
      %p114 = scmp.ne.s32.totalorder %s103, %s106
      %p115 = scmp.eq.s32.totalorder %s20, 1
      %p116 = por %p114, %p115
      %p117 = scmp.ne.s32.totalorder %s106, %s107
      %p118 = scmp.eq.s32.totalorder %s20, 0
      %p119 = por %p117, %p118
      %p120 = scmp.ne.s32.totalorder %s106, %s107
      %p121 = scmp.eq.s32.totalorder %s21, 1
      %p122 = por %p120, %p121
      %p124 = scmp.ne.s32.totalorder %s107, %s123
      %p125 = scmp.eq.s32.totalorder %s21, 0
      %p126 = por %p124, %p125
      %p127 = scmp.le.s32.totalorder 1, %s15
      %p128 = scmp.lt.s32.totalorder %s15, 3
      %p129 = pnand %p127, %p128
      %p130 = pneg %p129
      // Predicated region
      $region9: #{tpu_custom_call.1} parent=5 // pred_check
        _
      $region10: #{tpu_custom_call.1} parent=5 // pred_check_branch
        %132 = sbr.rel (%p129) target = $region12
      $region11: #{tpu_custom_call.1} parent=5 // pred_region
        %s133 = ssub.s32 %s15, 1
      $region12: #{tpu_custom_call.1} parent=5 // pred_fallthru
        _
      %p134 = scmp.lt.s32.totalorder %s15, 2
      // Predicated region
      $region13: #{tpu_custom_call.1} parent=5 // pred_check
        %p135 = pneg %p134
      $region14: #{tpu_custom_call.1} parent=5 // pred_check_branch
        %137 = sbr.rel (%p135) target = $region16
      $region15: #{tpu_custom_call.1} parent=5 // pred_region
        // Predicated region
        $region17: #{tpu_custom_call.1} parent=15 // pred_check
          %p138 = pneg %p35
        $region18: #{tpu_custom_call.1} parent=15 // pred_check_branch
          %140 = sbr.rel (%p138) target = $region20
        $region19: #{tpu_custom_call.1} parent=15 // pred_region
          %p141 = scmp.lt.s32.totalorder %s15, 1
          %s142 = scalar_select %p141, %s15, 1
          %s143 = smul.addr %s142, 8
          %s144 = scalar_lea.vmem %s0, %s143
        $region20: #{tpu_custom_call.1} parent=15 // pred_fallthru
          _
        // Predicated region
        $region21: #{tpu_custom_call.1} parent=15 // pred_check
          %p145 = pneg %p61
        $region22: #{tpu_custom_call.1} parent=15 // pred_check_branch
          %147 = sbr.rel (%p145) target = $region24
        $region23: #{tpu_custom_call.1} parent=15 // pred_region
          %p148 = scmp.lt.s32.totalorder %s15, 1
          %s149 = scalar_select %p148, %s15, 1
          %s150 = smul.addr %s149, 8
          %s151 = scalar_lea.vmem %s1, %s150
        $region24: #{tpu_custom_call.1} parent=15 // pred_fallthru
          _
        // Predicated region
        $region25: #{tpu_custom_call.1} parent=15 // pred_check
          %p152 = pneg %p87
        $region26: #{tpu_custom_call.1} parent=15 // pred_check_branch
          %154 = sbr.rel (%p152) target = $region28
        $region27: #{tpu_custom_call.1} parent=15 // pred_region
          %s155 = sand.u32 %s77, 1
          %s156 = scalar_lea.sflag [#allocation3], %s155
          %s157 = sand.u32 %s77, 1
          %s158 = smul.addr %s157, 48
          %s159 = scalar_lea.vmem [#allocation2], %s158
          %161 = vsyncadd %s156, 0
          %s162 = smul.addr %s15, 3
          %s163 = smul.addr %s162, 8
          %s164 = scalar_lea.hbm %s2, %s163
          %s165 = sshll.u32 %s164, 4
          %s166 = int_to_ptr.hbm [resolvable:$true] %s165
          %s167 = sshll.u32 %s159, 4
          %s168 = int_to_ptr.vmem [resolvable:$true] %s167
          %173 = dma.hbm_to_vmem [thread:$0]  %s166, 768, %s168, %s156, 768, 384, 24
        $region28: #{tpu_custom_call.1} parent=15 // pred_fallthru
          _
      $region16: #{tpu_custom_call.1} parent=5 // pred_fallthru
        _
      %p174 = scmp.le.s32.totalorder 1, %s15
      %p175 = scmp.lt.s32.totalorder %s15, 3
      %p176 = pnand %p174, %p175
      %p177 = pneg %p176
      // Predicated region
      $region29: #{tpu_custom_call.1} parent=5 // pred_check
        _
      $region30: #{tpu_custom_call.1} parent=5 // pred_check_branch
        %179 = sbr.rel (%p176) target = $region32
      $region31: #{tpu_custom_call.1} parent=5 // pred_region
        %s180 = ssub.s32 %s15, 1
        %s181 = sand.u32 %s80, 1
        %s182 = scalar_lea.sflag [#allocation3], %s181
        %s183 = sand.u32 %s80, 1
        %s184 = smul.addr %s183, 48
        %s185 = scalar_lea.vmem [#allocation2], %s184
        // Predicated region
        $region33: #{tpu_custom_call.1} parent=31 // pred_check
          %p186 = pneg %p93
        $region34: #{tpu_custom_call.1} parent=31 // pred_check_branch
          %188 = sbr.rel (%p186) target = $region36
        $region35: #{tpu_custom_call.1} parent=31 // pred_region
          %190 = dma.done %s182, 768
        $region36: #{tpu_custom_call.1} parent=31 // pred_fallthru
          _
        %p191 = scmp.lt.s32.totalorder %s20, 1
        %s192 = scalar_select %p191, %s20, 1
        %s193 = smul.addr %s192, 8
        %s194 = scalar_lea.vmem %s0, %s193
        %p195 = pneg %p41
        %p196 = pneg %p38
        %p197 = scmp.lt.s32.totalorder %s20, 1
        %s198 = scalar_select %p197, %s20, 1
        %s199 = smul.addr %s198, 8
        %s200 = scalar_lea.vmem %s1, %s199
        %p201 = pneg %p67
        %p202 = pneg %p64
        %s203 = sand.u32 %s80, 1
        %s204 = scalar_lea.sflag [#allocation3], %s203
        %s205 = sand.u32 %s80, 1
        %s206 = smul.addr %s205, 48
        %s207 = scalar_lea.vmem [#allocation2], %s206
        %p208 = pneg %p93
        %p209 = pneg %p90
        %p210 = pneg %p119
        %p211 = pneg %p116
        %s212 = sand.u32 %s106, 1
        %s213 = scalar_lea.sflag [#allocation4], %s212
        %s214 = sand.u32 %s106, 1
        %s215 = smul.addr %s214, 48
        %s216 = scalar_lea.vmem [#allocation5], %s215
        %p217 = scmp.lt.s32.totalorder %s20, 1
        %s218 = scalar_select %p217, %s20, 1
        %s219 = smul.addr %s218, 8
        %s220 = scalar_lea.vmem %s0, %s219
        %p221 = scmp.lt.s32.totalorder %s20, 1
        %s222 = scalar_select %p221, %s20, 1
        %s223 = smul.addr %s222, 8
        %s224 = scalar_lea.vmem %s1, %s223
        %v225 = vld [vmem:[%s185] sm:$0xff]
        %v226 = vld [vmem:[%s185 + $0x18] sm:$0xff]
        %v227 = vld [vmem:[%s185 + $0x8] sm:$0xff]
        %v228 = vld [vmem:[%s185 + $0x20] sm:$0xff]
        %v229 = vld [vmem:[%s185 + $0x10] sm:$0xff]
        %v230 = vld [vmem:[%s185 + $0x28] sm:$0xff]
        %v231 = vmul.f32 %v225, %v225
        %v232 = vmul.f32 %v226, %v226
        %v233 = vmul.f32 %v227, %v227
        %v234 = vmul.f32 %v228, %v228
        %v235 = vadd.f32 %v231, %v233
        %v236 = vadd.f32 %v232, %v234
        %v237 = vmul.f32 %v229, %v229
        %v238 = vmul.f32 %v230, %v230
        %v239 = vadd.f32 %v235, %v237
        %v240 = vadd.f32 %v236, %v238
        %v241 = vrsqrt.pop %v239
        %v242 = vmul.f32 %v241, %v239
        %v243 = vmul.f32 %v242, %v241
        %v244 = vmul.f32 0.5, %v243
        %v245 = vsub.f32 1.5, %v244
        %v246 = vmul.f32 %v241, %v245
        %vm247 = vweird.f32 %v239
        %vm248 = vweird.f32 %v241
        %vm249 = vmor %vm247, %vm248
        %v250 = vsel %vm249, %v241, %v246
        %v251 = vrsqrt.pop %v240
        %v252 = vmul.f32 %v251, %v240
        %v253 = vmul.f32 %v252, %v251
        %v254 = vmul.f32 0.5, %v253
        %v255 = vsub.f32 1.5, %v254
        %v256 = vmul.f32 %v251, %v255
        %vm257 = vweird.f32 %v240
        %vm258 = vweird.f32 %v251
        %vm259 = vmor %vm257, %vm258
        %v260 = vsel %vm259, %v251, %v256
        %vm261 = vcmp.gt.f32.partialorder %v239, 0.0
        %vm262 = vcmp.gt.f32.partialorder %v240, 0.0
        %v263 = vmul.f32 %v239, %v250
        %v264 = vmul.f32 %v240, %v260
        %v265 = vsel %vm261, %v263, 0.0
        %v266 = vsel %vm262, %v264, 0.0
        %v267 = vadd.f32 %v265, %v266
        %268 = vadd.xlane.f32.xlu0 %v267
        %v269 = vpop.xlane.xlu0 %268
        %v270 = vrcp.pop 256.0
        %v271 = vmul.f32 256.0, %v270
        %v272 = vsub.f32 1.0, %v271
        %v273 = vmul.f32 %v270, %v272
        %v274 = vadd.f32 %v270, %v273
        %vm275 = vweird.f32 %v270
        %v276 = vsel %vm275, %v270, %v274
        %v277 = vmul.f32 %v269, %v276
        %v278 = vsub.f32 %v265, %v277
        %v279 = vsub.f32 %v266, %v277
        %v280 = vmul.f32 %v278, %v278
        %v281 = vmul.f32 %v279, %v279
        %v282 = vadd.f32 %v280, %v281
        %283 = vadd.xlane.f32.xlu0 %v282
        %v284 = vpop.xlane.xlu0 %283
        %v285 = vmul.f32 %v284, %v276
        %v286 = vadd.f32 %v285, 1e-05
        %v287 = vrsqrt.pop %v286
        %v288 = vmul.f32 %v287, %v286
        %v289 = vmul.f32 %v288, %v287
        %v290 = vmul.f32 0.5, %v289
        %v291 = vsub.f32 1.5, %v290
        %v292 = vmul.f32 %v287, %v291
        %vm293 = vweird.f32 %v286
        %vm294 = vweird.f32 %v287
        %vm295 = vmor %vm293, %vm294
        %v296 = vsel %vm295, %v287, %v292
        %v297 = vld [vmem:[%s220] sm:$0xff]
        %v298 = vmul.f32 %v297, %v296
        %v299 = vld [vmem:[%s224] sm:$0xff]
        %v300 = vmul.f32 %v298, %v277
        %v301 = vsub.f32 %v299, %v300
        %303 = vset.pattern.permute.xlu0 0
        %304 = vperm.xlu0 %303, %v301
        %v305 = vpop.permute.xlu0 %304
        %v307 = vmul.f32 %v305, %v250
        %v308 = vmul.f32 %v305, %v260
        %310 = vset.pattern.permute.xlu0 0
        %311 = vperm.xlu0 %310, %v298
        %v312 = vpop.permute.xlu0 %311
        %v314 = vadd.f32 %v312, %v307
        %v315 = vadd.f32 %v312, %v308
        %v316 = vmul.f32 %v225, %v314
        %v317 = vmul.f32 %v226, %v315
        %318 = vst [vmem:[%s216] sm:$0xff] %v316
        %319 = vst [vmem:[%s216 + $0x18] sm:$0xff] %v317
        %v320 = vld [vmem:[%s185 + $0x8] sm:$0xff]
        %v321 = vld [vmem:[%s185 + $0x20] sm:$0xff]
        %v322 = vmul.f32 %v320, %v314
        %v323 = vmul.f32 %v321, %v315
        %324 = vst [vmem:[%s216 + $0x8] sm:$0xff] %v322
        %325 = vst [vmem:[%s216 + $0x20] sm:$0xff] %v323
        %v326 = vld [vmem:[%s185 + $0x10] sm:$0xff]
        %v327 = vld [vmem:[%s185 + $0x28] sm:$0xff]
        %v328 = vmul.f32 %v326, %v314
        %v329 = vmul.f32 %v327, %v315
        %330 = vst [vmem:[%s216 + $0x10] sm:$0xff] %v328
        %331 = vst [vmem:[%s216 + $0x28] sm:$0xff] %v329
        %s332 = sand.u32 %s106, 1
        %s333 = scalar_lea.sflag [#allocation4], %s332
        %s334 = sand.u32 %s106, 1
        %s335 = smul.addr %s334, 48
        %s336 = scalar_lea.vmem [#allocation5], %s335
        // Predicated region
        $region37: #{tpu_custom_call.1} parent=31 // pred_check
          %p337 = pneg %p116
        $region38: #{tpu_custom_call.1} parent=31 // pred_check_branch
          %339 = sbr.rel (%p337) target = $region40
        $region39: #{tpu_custom_call.1} parent=31 // pred_region
          %341 = vsyncadd %s333, 0
          %s342 = smul.addr %s20, 3
          %s343 = smul.addr %s342, 8
          %s344 = scalar_lea.hbm %s3, %s343
          %s345 = sshll.u32 %s336, 4
          %s346 = int_to_ptr.vmem [resolvable:$true] %s345
          %s347 = sshll.u32 %s344, 4
          %s348 = int_to_ptr.hbm [resolvable:$true] %s347
          %353 = dma.vmem_to_hbm [thread:$0]  %s346, 768, %s348, %s333, 384, 768, 24
        $region40: #{tpu_custom_call.1} parent=31 // pred_fallthru
          _
      $region32: #{tpu_custom_call.1} parent=5 // pred_fallthru
        _
      %p354 = scmp.le.s32.totalorder 2, %s15
      // Predicated region
      $region41: #{tpu_custom_call.1} parent=5 // pred_check
        %p355 = pneg %p354
      $region42: #{tpu_custom_call.1} parent=5 // pred_check_branch
        %357 = sbr.rel (%p355) target = $region44
      $region43: #{tpu_custom_call.1} parent=5 // pred_region
        %s358 = ssub.s32 %s15, 2
        // Predicated region
        $region45: #{tpu_custom_call.1} parent=43 // pred_check
          %p359 = pneg %p122
        $region46: #{tpu_custom_call.1} parent=43 // pred_check_branch
          %361 = sbr.rel (%p359) target = $region48
        $region47: #{tpu_custom_call.1} parent=43 // pred_region
          %s362 = sand.u32 %s107, 1
          %s363 = scalar_lea.sflag [#allocation4], %s362
          %s364 = sand.u32 %s107, 1
          %s365 = smul.addr %s364, 48
          %s366 = scalar_lea.vmem [#allocation5], %s365
          %368 = dma.done %s363, 768
        $region48: #{tpu_custom_call.1} parent=43 // pred_fallthru
          _
      $region44: #{tpu_custom_call.1} parent=5 // pred_fallthru
        _
    $region6: #{tpu_custom_call.1} parent=1 // loop_footer
      %s19 = sadd.s32 1, %s15
    $region7: #{tpu_custom_call.1} parent=1 // loop_footer_branch
      %14 = sbr.rel target = $region3
    $region8: #{tpu_custom_call.1} parent=1 // loop_exit
      _
    %369 = vsyncpa [#allocation3], 1
    %s370 = scalar_lea.sflag [#allocation3], 1
    %371 = vsyncpa %s370, 1
    %372 = vsyncpa [#allocation4], 1
    %s373 = scalar_lea.sflag [#allocation4], 1
    %374 = vsyncpa %s373, 1

</llo_original>
